<compile_context>
chip_gen: v6e
topology: v6e:2x2x1
jax: 0.10.0
libtpu: 0.0.40
codegen_flags: <defaults>
</compile_context>

<pallas_src>
import functools

import jax
import jax.numpy as jnp
from jax import lax
from jax.experimental import pallas as pl
from jax.experimental.pallas import tpu as pltpu

LEAKY_SLOPE = 0.2          # PyG GATConv default negative_slope
LANE = 128
TM = 256                   # target-row tile (fills a 256-wide MXU on v6e/v7x)
TK = 512                   # neighbor/column tile for the attend pass
VMEM_LIMIT = 48 * 1024 * 1024
NEG_INF = -1e30            # used only by the pure-JAX reference


def _round_up(x, m):
    return ((x + m - 1) // m) * m


def _pad2(a, shape):
    return jnp.pad(a, [(0, s - d) for d, s in zip(a.shape, shape)])


# ------------------------------- kernels -------------------------------------
def _gat_project_kernel(x_ref, w_ref, asrc_ref, adst_ref, h_ref, s_ref, d_ref):
    # h = x @ W : bf16 operands (pre-cast in the wrapper), f32 MXU accumulation.
    h = jnp.dot(x_ref[...], w_ref[...],
                preferred_element_type=jnp.float32)            # (TM, F) f32
    h_ref[...] = h.astype(jnp.bfloat16)
    # Per-node logits as lane-dense (1, TM) rows (unmasked vector stores):
    #   s_j = <h_j, a_src>,  d_i = <h_i, a_dst>
    s_ref[...] = lax.dot_general(asrc_ref[...], h,
                                 (((1,), (1,)), ((), ())),
                                 preferred_element_type=jnp.float32)
    d_ref[...] = lax.dot_general(adst_ref[...], h,
                                 (((1,), (1,)), ((), ())),
                                 preferred_element_type=jnp.float32)


def _gat_attend_kernel(s_ref, d_ref, adj_ref, h_ref, b_ref, o_ref,
                       m_sc, l_sc, acc_sc, *, apply_relu):
    k = pl.program_id(1)

    @pl.when(k == 0)
    def _():
        m_sc[...] = jnp.full_like(m_sc, -jnp.inf)
        l_sc[...] = jnp.zeros_like(l_sc)
        acc_sc[...] = jnp.zeros_like(acc_sc)

    # e[i, j] = LeakyReLU(d_i + s_j); slope < 1 so the max form is exact and
    # saves a compare+select per adjacency element.
    e = d_ref[...] + s_ref[...]                                # (TM, TK) f32
    e = jnp.maximum(e, LEAKY_SLOPE * e)

    # Online softmax with deferred normalization.  The running max is taken
    # over the *unmasked* logits, which is a valid stabilizer for a 0/1 mask;
    # masking is applied by multiply (no NEG_INF select on the O(N^2) path).
    m_prev = m_sc[...]
    m_new = jnp.maximum(m_prev, jnp.max(e, axis=1, keepdims=True))
    alpha = jnp.exp(m_prev - m_new)
    p = jnp.exp(e - m_new) * adj_ref[...].astype(jnp.float32)  # unnormalized

    l_sc[...] = alpha * l_sc[...] + jnp.sum(p, axis=1, keepdims=True)
    # Aggregate on the MXU: bf16 operands, f32 accumulation.
    acc_sc[...] = alpha * acc_sc[...] + jnp.dot(
        p.astype(jnp.bfloat16), h_ref[...], preferred_element_type=jnp.float32)
    m_sc[...] = m_new

    @pl.when(k == pl.num_programs(1) - 1)
    def _():
        # Padded target rows have l == 0; clamp so the approx reciprocal stays
        # finite (their output is garbage but is sliced off in the wrapper).
        inv = pl.reciprocal(jnp.maximum(l_sc[...], 1e-30), approx=True)
        out = acc_sc[...] * inv + b_ref[...]
        if apply_relu:
            out = jnp.maximum(out, 0.0)
        o_ref[...] = out.astype(o_ref.dtype)


# ---------------------------- layer wrapper -----------------------------------
def gat_layer(x, w, a_src, a_dst, bias, adj, *, tk, apply_relu, out_dtype):
    """One GATConv layer on lane/row padded inputs.

    x    : (N_pad, F_in_pad)   bf16
    w    : (F_in_pad, F_out_pad) bf16
    a_*  : (1, F_out_pad)      f32
    bias : (1, F_out_pad)      f32
    adj  : (N_pad, N_pad)      int8 mask, adj[i, j] = 1 iff edge j -> i (+self)
    returns (N_pad, F_out_pad) out_dtype
    """
    n_pad, f_in = x.shape
    f_out = w.shape[1]
    n_row_tiles = n_pad // TM
    n_col_tiles = n_pad // tk

    # Pass 1: projection + per-node attention logits (lane-dense rows).
    h_bf16, s_row, d_row = pl.pallas_call(
        _gat_project_kernel,
        out_shape=(jax.ShapeDtypeStruct((n_pad, f_out), jnp.bfloat16),
                   jax.ShapeDtypeStruct((1, n_pad), jnp.float32),
                   jax.ShapeDtypeStruct((1, n_pad), jnp.float32)),
        grid=(n_row_tiles,),
        in_specs=[pl.BlockSpec((TM, f_in), lambda i: (i, 0)),
                  pl.BlockSpec((f_in, f_out), lambda i: (0, 0)),
                  pl.BlockSpec((1, f_out), lambda i: (0, 0)),
                  pl.BlockSpec((1, f_out), lambda i: (0, 0))],
        out_specs=(pl.BlockSpec((TM, f_out), lambda i: (i, 0)),
                   pl.BlockSpec((1, TM), lambda i: (0, i)),
                   pl.BlockSpec((1, TM), lambda i: (0, i))),
        compiler_params=pltpu.CompilerParams(
            dimension_semantics=("parallel",),
            vmem_limit_bytes=VMEM_LIMIT),
    )(x, w, a_src, a_dst)

    # Tiny XLA transpose outside the kernel: keeps pass-1 stores lane-dense
    # while giving the attend pass a per-target-row column.
    d_col = d_row.T                                            # (N_pad, 1)

    # Pass 2: column-tiled masked softmax attention + aggregation.
    kernel = functools.partial(_gat_attend_kernel, apply_relu=apply_relu)
    out = pl.pallas_call(
        kernel,
        out_shape=jax.ShapeDtypeStruct((n_pad, f_out), out_dtype),
        grid=(n_row_tiles, n_col_tiles),
        in_specs=[pl.BlockSpec((1, tk), lambda i, k: (0, k)),      # s row tile
                  pl.BlockSpec((TM, 1), lambda i, k: (i, 0)),      # d col tile
                  pl.BlockSpec((TM, tk), lambda i, k: (i, k)),     # adj block
                  pl.BlockSpec((tk, f_out), lambda i, k: (k, 0)),  # h col tile
                  pl.BlockSpec((1, f_out), lambda i, k: (0, 0))],  # bias
        out_specs=pl.BlockSpec((TM, f_out), lambda i, k: (i, 0)),
        scratch_shapes=[pltpu.VMEM((TM, 1), jnp.float32),          # running max
                        pltpu.VMEM((TM, 1), jnp.float32),          # running sum
                        pltpu.VMEM((TM, f_out), jnp.float32)],     # accumulator
        compiler_params=pltpu.CompilerParams(
            dimension_semantics=("parallel", "arbitrary"),
            vmem_limit_bytes=VMEM_LIMIT),
    )(s_row, d_col, adj, h_bf16, bias)
    return out


def my_gnn_forward(x, edge_index, params):
    """MyGNN.forward: gat1 -> relu -> gat2. Returns (N, classes) f32."""
    n, f_in = x.shape
    hid = params["w1"].shape[1]
    cls = params["w2"].shape[1]

    n_pad = _round_up(max(n, TM), TM)
    tk = TK if n_pad % TK == 0 else TM
    f_in_p = _round_up(f_in, LANE)
    hid_p = _round_up(hid, LANE)
    cls_p = _round_up(cls, LANE)

    # Dense int8 adjacency mask adj[target, source] with self-loops (GATConv's
    # add_self_loops=True default).  int8 is the only O(N^2) operand and halves
    # HBM traffic on the attend pass vs bf16; built directly in int8.
    adj = jnp.zeros((n_pad, n_pad), jnp.int8)
    adj = adj.at[edge_index[1], edge_index[0]].set(1)
    idx = jnp.arange(n)
    adj = adj.at[idx, idx].set(1)

    # Pre-cast matmul operands to bf16 in the wrapper (removes per-tile casts).
    x_p = _pad2(x, (n_pad, f_in_p)).astype(jnp.bfloat16)
    w1 = _pad2(params["w1"], (f_in_p, hid_p)).astype(jnp.bfloat16)
    a_s1 = _pad2(params["a_src1"], (1, hid_p))
    a_d1 = _pad2(params["a_dst1"], (1, hid_p))
    b1 = _pad2(params["b1"], (1, hid_p))
    w2 = _pad2(params["w2"], (hid_p, cls_p)).astype(jnp.bfloat16)
    a_s2 = _pad2(params["a_src2"], (1, cls_p))
    a_d2 = _pad2(params["a_dst2"], (1, cls_p))
    b2 = _pad2(params["b2"], (1, cls_p))

    # Layer-1 output stays bf16 (halves the h1 HBM round trip into layer 2).
    h1 = gat_layer(x_p, w1, a_s1, a_d1, b1, adj, tk=tk,
                   apply_relu=True, out_dtype=jnp.bfloat16)
    h2 = gat_layer(h1, w2, a_s2, a_d2, b2, adj, tk=tk,
                   apply_relu=False, out_dtype=jnp.float32)
    return h2[:n, :cls]


# ---------------- pure-JAX reference (for correctness check) -----------------
def _gat_ref(x, w, a_src, a_dst, b, adj, relu):
    h = x @ w
    s = (h * a_src).sum(axis=1)        # (N,)
    d = (h * a_dst).sum(axis=1)        # (N,)
    e = d[:, None] + s[None, :]
    e = jnp.where(e > 0, e, LEAKY_SLOPE * e)
    e = jnp.where(adj > 0, e, NEG_INF)
    a = jax.nn.softmax(e, axis=1)
    out = a @ h + b
    return jnp.maximum(out, 0.0) if relu else out


def _my_gnn_ref(x, edge_index, params):
    n = x.shape[0]
    adj = jnp.zeros((n, n), jnp.float32).at[edge_index[1], edge_index[0]].set(1.0)
    adj = jnp.maximum(adj, jnp.eye(n, dtype=jnp.float32))
    h = _gat_ref(x, params["w1"], params["a_src1"], params["a_dst1"],
                 params["b1"], adj, True)
    return _gat_ref(h, params["w2"], params["a_src2"], params["a_dst2"],
                    params["b2"], adj, False)


if __name__ == "__main__":
    # N=600 -> padded to 768 -> 3 row tiles x 3 column tiles (exercises the
    # online-softmax accumulation across multiple neighbor tiles).
    N, F_IN, HID, CLS = 600, 8, 32, 2

    key = jax.random.PRNGKey(0)
    ks = jax.random.split(key, 9)

    # Node features (stand-in for the CSV-derived feature matrix).
    x = jax.random.normal(ks[0], (N, F_IN), dtype=jnp.float32)

    # Deterministic synthetic graph: bidirectional ring, edge_index = [src; dst].
    src = jnp.arange(N, dtype=jnp.int32)
    dst = (src + 1) % N
    edge_index = jnp.stack([jnp.concatenate([src, dst]),
                            jnp.concatenate([dst, src])])              # (2, 2N)

    # Deterministic parameters (GATConv: linear weight, att_src, att_dst, bias).
    params = {
        "w1":     0.1 * jax.random.normal(ks[1], (F_IN, HID), jnp.float32),
        "a_src1": 0.1 * jax.random.normal(ks[2], (1, HID), jnp.float32),
        "a_dst1": 0.1 * jax.random.normal(ks[3], (1, HID), jnp.float32),
        "b1":     0.1 * jax.random.normal(ks[4], (1, HID), jnp.float32),
        "w2":     0.1 * jax.random.normal(ks[5], (HID, CLS), jnp.float32),
        "a_src2": 0.1 * jax.random.normal(ks[6], (1, CLS), jnp.float32),
        "a_dst2": 0.1 * jax.random.normal(ks[7], (1, CLS), jnp.float32),
        "b2":     0.1 * jax.random.normal(ks[8], (1, CLS), jnp.float32),
    }

    out = my_gnn_forward(x, edge_index, params)
    out = jax.block_until_ready(out)

    ref = _my_gnn_ref(x, edge_index, params)
    assert out.shape == (N, CLS)
    # bf16 MXU operands / bf16 inter-layer activations + approx reciprocal:
    # compare with a relaxed tolerance (intentional precision trade-off).
    assert jnp.allclose(out, ref, atol=5e-2, rtol=5e-2), "mismatch vs reference"

    print("KERNEL_OK")
</pallas_src>

<mosaic_0001>
module attributes {stable_mosaic.version = 11 : i64} {
  func.func @_gat_project_kernel(%arg0: i32, %arg1: memref<256x128xbf16, #tpu.memory_space<vmem>>, %arg2: memref<128x128xbf16, #tpu.memory_space<vmem>>, %arg3: memref<1x128xf32, #tpu.memory_space<vmem>>, %arg4: memref<1x128xf32, #tpu.memory_space<vmem>>, %arg5: memref<256x128xbf16, #tpu.memory_space<vmem>>, %arg6: memref<1x256xf32, #tpu.memory_space<vmem>>, %arg7: memref<1x256xf32, #tpu.memory_space<vmem>>) attributes {dimension_semantics = [#tpu.dimension_semantics<parallel>], iteration_bounds = array<i64: 3>, scalar_prefetch = 0 : i64, scratch_operands = 0 : i64, tpu.core_type = #tpu.core_type<tc>, window_params = [{transform_indices = @transform_0, window_bounds = array<i64: 256, 128>}, {pipeline_mode = #tpu.pipeline_mode<synchronous>, transform_indices = @transform_1, window_bounds = array<i64: 128, 128>}, {pipeline_mode = #tpu.pipeline_mode<synchronous>, transform_indices = @transform_2, window_bounds = array<i64: 1, 128>}, {pipeline_mode = #tpu.pipeline_mode<synchronous>, transform_indices = @transform_3, window_bounds = array<i64: 1, 128>}, {transform_indices = @transform_4, window_bounds = array<i64: 256, 128>}, {transform_indices = @transform_5, window_bounds = array<i64: 1, 256>}, {transform_indices = @transform_6, window_bounds = array<i64: 1, 256>}]} {
    %c0 = arith.constant 0 : index
    %c0_0 = arith.constant 0 : index
    %0 = vector.load %arg1[%c0, %c0_0] : memref<256x128xbf16, #tpu.memory_space<vmem>>, vector<256x128xbf16>
    %c0_1 = arith.constant 0 : index
    %c0_2 = arith.constant 0 : index
    %1 = vector.load %arg2[%c0_1, %c0_2] : memref<128x128xbf16, #tpu.memory_space<vmem>>, vector<128x128xbf16>
    %cst = arith.constant dense<0.000000e+00> : vector<256x128xf32>
    %2 = tpu.matmul %0, %1, %cst {dimension_numbers = #tpu.dot_dimension_numbers<[1], [0], [0], [1], [0, 0, 1, 1], [], []>} : vector<256x128xbf16>, vector<128x128xbf16>, vector<256x128xf32> -> vector<256x128xf32>
    %3 = arith.truncf %2 : vector<256x128xf32> to vector<256x128xbf16>
    %c0_3 = arith.constant 0 : index
    %c0_4 = arith.constant 0 : index
    %4 = vector.load %arg5[%c0_3, %c0_4] : memref<256x128xbf16, #tpu.memory_space<vmem>>, vector<256x128xbf16>
    tpu.vector_store %arg5[%c0_3, %c0_4], %3 {strides = array<i32>} : memref<256x128xbf16, #tpu.memory_space<vmem>>, vector<256x128xbf16>,
    %c0_5 = arith.constant 0 : index
    %c0_6 = arith.constant 0 : index
    %5 = vector.load %arg3[%c0_5, %c0_6] : memref<1x128xf32, #tpu.memory_space<vmem>>, vector<1x128xf32>
    %cst_7 = arith.constant dense<0.000000e+00> : vector<1x256xf32>
    %6 = tpu.matmul %5, %2, %cst_7 {dimension_numbers = #tpu.dot_dimension_numbers<[1], [1], [0], [0], [0, 0, 1, 0], [], []>} : vector<1x128xf32>, vector<256x128xf32>, vector<1x256xf32> -> vector<1x256xf32>
    %c0_8 = arith.constant 0 : index
    %c0_9 = arith.constant 0 : index
    %7 = vector.load %arg6[%c0_8, %c0_9] : memref<1x256xf32, #tpu.memory_space<vmem>>, vector<1x256xf32>
    tpu.vector_store %arg6[%c0_8, %c0_9], %6 {strides = array<i32>} : memref<1x256xf32, #tpu.memory_space<vmem>>, vector<1x256xf32>,
    %c0_10 = arith.constant 0 : index
    %c0_11 = arith.constant 0 : index
    %8 = vector.load %arg4[%c0_10, %c0_11] : memref<1x128xf32, #tpu.memory_space<vmem>>, vector<1x128xf32>
    %cst_12 = arith.constant dense<0.000000e+00> : vector<1x256xf32>
    %9 = tpu.matmul %8, %2, %cst_12 {dimension_numbers = #tpu.dot_dimension_numbers<[1], [1], [0], [0], [0, 0, 1, 0], [], []>} : vector<1x128xf32>, vector<256x128xf32>, vector<1x256xf32> -> vector<1x256xf32>
    %c0_13 = arith.constant 0 : index
    %c0_14 = arith.constant 0 : index
    %10 = vector.load %arg7[%c0_13, %c0_14] : memref<1x256xf32, #tpu.memory_space<vmem>>, vector<1x256xf32>
    tpu.vector_store %arg7[%c0_13, %c0_14], %9 {strides = array<i32>} : memref<1x256xf32, #tpu.memory_space<vmem>>, vector<1x256xf32>,
    return
  }
  func.func @transform_0(%arg0: i32) -> (i32, i32) {
    %c0_i32 = arith.constant 0 : i32
    %c0_i32_0 = arith.constant 0 : i32
    return %arg0, %c0_i32 : i32, i32
  }
  func.func @transform_1(%arg0: i32) -> (i32, i32) {
    %c0_i32 = arith.constant 0 : i32
    %c0_i32_0 = arith.constant 0 : i32
    %c0_i32_1 = arith.constant 0 : i32
    return %c0_i32, %c0_i32_0 : i32, i32
  }
  func.func @transform_2(%arg0: i32) -> (i32, i32) {
    %c0_i32 = arith.constant 0 : i32
    %c0_i32_0 = arith.constant 0 : i32
    %c0_i32_1 = arith.constant 0 : i32
    return %c0_i32, %c0_i32_0 : i32, i32
  }
  func.func @transform_3(%arg0: i32) -> (i32, i32) {
    %c0_i32 = arith.constant 0 : i32
    %c0_i32_0 = arith.constant 0 : i32
    %c0_i32_1 = arith.constant 0 : i32
    return %c0_i32, %c0_i32_0 : i32, i32
  }
  func.func @transform_4(%arg0: i32) -> (i32, i32) {
    %c0_i32 = arith.constant 0 : i32
    %c0_i32_0 = arith.constant 0 : i32
    return %arg0, %c0_i32 : i32, i32
  }
  func.func @transform_5(%arg0: i32) -> (i32, i32) {
    %c0_i32 = arith.constant 0 : i32
    %c0_i32_0 = arith.constant 0 : i32
    return %c0_i32, %arg0 : i32, i32
  }
  func.func @transform_6(%arg0: i32) -> (i32, i32) {
    %c0_i32 = arith.constant 0 : i32
    %c0_i32_0 = arith.constant 0 : i32
    return %c0_i32, %arg0 : i32, i32
  }
}

</mosaic_0001>

<llo_original>
// kernel: tpu_custom_call.1
$region0: #{tpu_custom_call.1}
  #allocation0 [shape = 'u32[]', space=smem, size = 0x4, offset = 0x4, fixed_abs, tag = 'smem constant byte address 0x4 - core index']
  #allocation1 [shape = 'u32[144,128]{1,0:T(1,128)}', space=vmem, size = 0x12000, scoped, tag = 'internal scratch']
  %s0 = inlined_call_operand.hbm [shape: bf16[768,128], index: 0, kind: input, shape index: {}]
  %s1 = inlined_call_operand.hbm [shape: bf16[128,128], index: 1, kind: input, shape index: {}]
  %s2 = inlined_call_operand.vmem [shape: f32[1,128], index: 2, kind: input, shape index: {}]
  %s3 = inlined_call_operand.vmem [shape: f32[1,128], index: 3, kind: input, shape index: {}]
  %s4 = inlined_call_operand.hbm [shape: bf16[768,128], index: 4, kind: output, shape index: {0}]
  %s5 = inlined_call_operand.hbm [shape: f32[1,768], index: 5, kind: output, shape index: {1}]
  %s6 = inlined_call_operand.hbm [shape: f32[1,768], index: 6, kind: output, shape index: {2}]
  %7 = xla_tuple %s4, %s5, %s6
  %s8 = sld [smem:[#allocation0]]
  $region73: #{tpu_custom_call.1} parent=0
    _
  %s10 = ssub.s32 1, %s8
  %s11 = scalar_select 0, %s10, %s8
  $region1: #{tpu_custom_call.1} parent=0
    #allocation2 [shape = 'u8[131072]{0}', space=vmem, size = 0x20000, scoped, tag = 'input window, operand 0']
    #allocation3 [shape = 's32[2]{0}', space=sflag, size = 0x8, scoped, tag = 'scoped memory for tpu_custom_call.1']
    #allocation4 [shape = 's32[2]{0}', space=sflag, size = 0x8, scoped, tag = 'scoped memory for tpu_custom_call.1']
    #allocation5 [shape = 'u8[32768]{0}', space=vmem, size = 0x8000, scoped, tag = 'input window, operand 1, single buffered']
    #allocation6 [shape = 's32[1]{0}', space=sflag, size = 0x4, scoped, tag = 'scoped memory for tpu_custom_call.1']
    #allocation7 [shape = 'u8[131072]{0}', space=vmem, size = 0x20000, scoped, tag = 'output window, operand 0']
    #allocation8 [shape = 'u8[2048]{0}', space=vmem, size = 0x800, scoped, tag = 'output window, operand 1']
    #allocation9 [shape = 's32[2]{0}', space=sflag, size = 0x8, scoped, tag = 'scoped memory for tpu_custom_call.1']
    #allocation10 [shape = 'u8[2048]{0}', space=vmem, size = 0x800, scoped, tag = 'output window, operand 2']
    %12 = vsyncpa [#allocation3], 0
    %s13 = scalar_lea.sflag [#allocation3], 1
    %14 = vsyncpa %s13, 0
    %15 = vsyncpa [#allocation6], 0
    %16 = vsyncpa [#allocation4], 0
    %s17 = scalar_lea.sflag [#allocation4], 1
    %18 = vsyncpa %s17, 0
    %19 = vsyncpa [#allocation9], 0
    %s20 = scalar_lea.sflag [#allocation9], 1
    %21 = vsyncpa %s20, 0
    loop: start=0, step=1, limit=5
    $region2: #{tpu_custom_call.1} parent=1 // loop_pre_header
      _
    $region3: #{tpu_custom_call.1} parent=1 // loop_header
      %s23 = sphi 0, %s27
      %p24 = scmp.ge.s32.totalorder %s23, 5
      %s33 = sphi 0, %s35
      %s36 = sphi 0, %s33
      %s37 = sphi 0, %s36
      %s53 = sphi 0, %s37
      %s57 = sphi 0, %s57
      %s59 = sphi 0, %s57
      %s60 = sphi 0, %s59
      %s74 = sphi 0, %s60
      %s78 = sphi 0, %s78
      %s80 = sphi 0, %s78
      %s81 = sphi 0, %s80
      %s95 = sphi 0, %s81
      %s99 = sphi 0, %s99
      %s101 = sphi 0, %s99
      %s102 = sphi 0, %s101
      %s116 = sphi 0, %s102
      %s122 = sphi 0, %s124
      %s125 = sphi 0, %s122
      %s126 = sphi 0, %s125
      %s142 = sphi 0, %s126
      %s148 = sphi 0, %s150
      %s151 = sphi 0, %s148
      %s152 = sphi 0, %s151
      %s168 = sphi 0, %s152
      %s174 = sphi 0, %s176
      %s177 = sphi 0, %s174
      %s178 = sphi 0, %s177
      %s194 = sphi 0, %s178
    $region4: #{tpu_custom_call.1} parent=1 // loop_header_branch
      %26 = sbr.rel (%p24) target = $region8
    $region5: #{tpu_custom_call.1} parent=1 // loop_body
      %s28 = ssub.s32 %s23, 1
      %s29 = ssub.s32 %s23, 2
      %s30 = sadd.s32 %s23, 1
      %s31 = ssub.s32 %s23, %s30
      %p32 = scmp.eq.s32.totalorder %s31, 0
      %s34 = sadd.s32 %s33, 1
      %s35 = scalar_select %p32, %s33, %s34
      %p38 = pneg %p32
      %p39 = scmp.eq.s32.totalorder %s23, 2
      %p40 = por %p38, %p39
      %p41 = scmp.ne.s32.totalorder %s33, %s36
      %p42 = scmp.eq.s32.totalorder %s23, 0
      %p43 = por %p41, %p42
      %p44 = scmp.ne.s32.totalorder %s33, %s36
      %p45 = scmp.eq.s32.totalorder %s28, 2
      %p46 = por %p44, %p45
      %p47 = scmp.ne.s32.totalorder %s36, %s37
      %p48 = scmp.eq.s32.totalorder %s28, 0
      %p49 = por %p47, %p48
      %p50 = scmp.ne.s32.totalorder %s36, %s37
      %p51 = scmp.eq.s32.totalorder %s29, 2
      %p52 = por %p50, %p51
      %p54 = scmp.ne.s32.totalorder %s37, %s53
      %p55 = scmp.eq.s32.totalorder %s29, 0
      %p56 = por %p54, %p55
      %s58 = sadd.s32 %s57, 1
      %p61 = scmp.eq.s32.totalorder %s23, 2
      %p62 = scmp.ne.s32.totalorder %s57, %s59
      %p63 = scmp.eq.s32.totalorder %s23, 0
      %p64 = por %p62, %p63
      %p65 = scmp.ne.s32.totalorder %s57, %s59
      %p66 = scmp.eq.s32.totalorder %s28, 2
      %p67 = por %p65, %p66
      %p68 = scmp.ne.s32.totalorder %s59, %s60
      %p69 = scmp.eq.s32.totalorder %s28, 0
      %p70 = por %p68, %p69
      %p71 = scmp.ne.s32.totalorder %s59, %s60
      %p72 = scmp.eq.s32.totalorder %s29, 2
      %p73 = por %p71, %p72
      %p75 = scmp.ne.s32.totalorder %s60, %s74
      %p76 = scmp.eq.s32.totalorder %s29, 0
      %p77 = por %p75, %p76
      %s79 = sadd.s32 %s78, 1
      %p82 = scmp.eq.s32.totalorder %s23, 2
      %p83 = scmp.ne.s32.totalorder %s78, %s80
      %p84 = scmp.eq.s32.totalorder %s23, 0
      %p85 = por %p83, %p84
      %p86 = scmp.ne.s32.totalorder %s78, %s80
      %p87 = scmp.eq.s32.totalorder %s28, 2
      %p88 = por %p86, %p87
      %p89 = scmp.ne.s32.totalorder %s80, %s81
      %p90 = scmp.eq.s32.totalorder %s28, 0
      %p91 = por %p89, %p90
      %p92 = scmp.ne.s32.totalorder %s80, %s81
      %p93 = scmp.eq.s32.totalorder %s29, 2
      %p94 = por %p92, %p93
      %p96 = scmp.ne.s32.totalorder %s81, %s95
      %p97 = scmp.eq.s32.totalorder %s29, 0
      %p98 = por %p96, %p97
      %s100 = sadd.s32 %s99, 1
      %p103 = scmp.eq.s32.totalorder %s23, 2
      %p104 = scmp.ne.s32.totalorder %s99, %s101
      %p105 = scmp.eq.s32.totalorder %s23, 0
      %p106 = por %p104, %p105
      %p107 = scmp.ne.s32.totalorder %s99, %s101
      %p108 = scmp.eq.s32.totalorder %s28, 2
      %p109 = por %p107, %p108
      %p110 = scmp.ne.s32.totalorder %s101, %s102
      %p111 = scmp.eq.s32.totalorder %s28, 0
      %p112 = por %p110, %p111
      %p113 = scmp.ne.s32.totalorder %s101, %s102
      %p114 = scmp.eq.s32.totalorder %s29, 2
      %p115 = por %p113, %p114
      %p117 = scmp.ne.s32.totalorder %s102, %s116
      %p118 = scmp.eq.s32.totalorder %s29, 0
      %p119 = por %p117, %p118
      %s120 = ssub.s32 %s23, %s30
      %p121 = scmp.eq.s32.totalorder %s120, 0
      %s123 = sadd.s32 %s122, 1
      %s124 = scalar_select %p121, %s122, %s123
      %p127 = pneg %p121
      %p128 = scmp.eq.s32.totalorder %s23, 2
      %p129 = por %p127, %p128
      %p130 = scmp.ne.s32.totalorder %s122, %s125
      %p131 = scmp.eq.s32.totalorder %s23, 0
      %p132 = por %p130, %p131
      %p133 = scmp.ne.s32.totalorder %s122, %s125
      %p134 = scmp.eq.s32.totalorder %s28, 2
      %p135 = por %p133, %p134
      %p136 = scmp.ne.s32.totalorder %s125, %s126
      %p137 = scmp.eq.s32.totalorder %s28, 0
      %p138 = por %p136, %p137
      %p139 = scmp.ne.s32.totalorder %s125, %s126
      %p140 = scmp.eq.s32.totalorder %s29, 2
      %p141 = por %p139, %p140
      %p143 = scmp.ne.s32.totalorder %s126, %s142
      %p144 = scmp.eq.s32.totalorder %s29, 0
      %p145 = por %p143, %p144
      %s146 = ssub.s32 %s23, %s30
      %p147 = scmp.eq.s32.totalorder %s146, 0
      %s149 = sadd.s32 %s148, 1
      %s150 = scalar_select %p147, %s148, %s149
      %p153 = pneg %p147
      %p154 = scmp.eq.s32.totalorder %s23, 2
      %p155 = por %p153, %p154
      %p156 = scmp.ne.s32.totalorder %s148, %s151
      %p157 = scmp.eq.s32.totalorder %s23, 0
      %p158 = por %p156, %p157
      %p159 = scmp.ne.s32.totalorder %s148, %s151
      %p160 = scmp.eq.s32.totalorder %s28, 2
      %p161 = por %p159, %p160
      %p162 = scmp.ne.s32.totalorder %s151, %s152
      %p163 = scmp.eq.s32.totalorder %s28, 0
      %p164 = por %p162, %p163
      %p165 = scmp.ne.s32.totalorder %s151, %s152
      %p166 = scmp.eq.s32.totalorder %s29, 2
      %p167 = por %p165, %p166
      %p169 = scmp.ne.s32.totalorder %s152, %s168
      %p170 = scmp.eq.s32.totalorder %s29, 0
      %p171 = por %p169, %p170
      %s172 = ssub.s32 %s23, %s30
      %p173 = scmp.eq.s32.totalorder %s172, 0
      %s175 = sadd.s32 %s174, 1
      %s176 = scalar_select %p173, %s174, %s175
      %p179 = pneg %p173
      %p180 = scmp.eq.s32.totalorder %s23, 2
      %p181 = por %p179, %p180
      %p182 = scmp.ne.s32.totalorder %s174, %s177
      %p183 = scmp.eq.s32.totalorder %s23, 0
      %p184 = por %p182, %p183
      %p185 = scmp.ne.s32.totalorder %s174, %s177
      %p186 = scmp.eq.s32.totalorder %s28, 2
      %p187 = por %p185, %p186
      %p188 = scmp.ne.s32.totalorder %s177, %s178
      %p189 = scmp.eq.s32.totalorder %s28, 0
      %p190 = por %p188, %p189
      %p191 = scmp.ne.s32.totalorder %s177, %s178
      %p192 = scmp.eq.s32.totalorder %s29, 2
      %p193 = por %p191, %p192
      %p195 = scmp.ne.s32.totalorder %s178, %s194
      %p196 = scmp.eq.s32.totalorder %s29, 0
      %p197 = por %p195, %p196
      %p198 = scmp.le.s32.totalorder 1, %s23
      %p199 = scmp.lt.s32.totalorder %s23, 4
      %p200 = pnand %p198, %p199
      %p201 = pneg %p200
      // Predicated region
      $region9: #{tpu_custom_call.1} parent=5 // pred_check
        _
      $region10: #{tpu_custom_call.1} parent=5 // pred_check_branch
        %203 = sbr.rel (%p200) target = $region12
      $region11: #{tpu_custom_call.1} parent=5 // pred_region
        %s204 = ssub.s32 %s23, 1
        // Predicated region
        $region13: #{tpu_custom_call.1} parent=11 // pred_check
          %p205 = pneg %p70
        $region14: #{tpu_custom_call.1} parent=11 // pred_check_branch
          %207 = sbr.rel (%p205) target = $region16
        $region15: #{tpu_custom_call.1} parent=11 // pred_region
          %s209 = ssub.s32 1024, 1024
          %210 = vsyncadd [#allocation6], %s209
          %s211 = sshll.u32 [#allocation5], 4
          %s212 = int_to_ptr.vmem [resolvable:$true] %s211
          %217 = dma.hbm_to_vmem [thread:$0]  %s1, 1024, %s212, [#allocation6], 64, 64, 4
        $region16: #{tpu_custom_call.1} parent=11 // pred_fallthru
          _
        // Predicated region
        $region17: #{tpu_custom_call.1} parent=11 // pred_check
          %p218 = pneg %p91
        $region18: #{tpu_custom_call.1} parent=11 // pred_check_branch
          %220 = sbr.rel (%p218) target = $region20
        $region19: #{tpu_custom_call.1} parent=11 // pred_region
          _
        $region20: #{tpu_custom_call.1} parent=11 // pred_fallthru
          _
        // Predicated region
        $region21: #{tpu_custom_call.1} parent=11 // pred_check
          %p221 = pneg %p112
        $region22: #{tpu_custom_call.1} parent=11 // pred_check_branch
          %223 = sbr.rel (%p221) target = $region24
        $region23: #{tpu_custom_call.1} parent=11 // pred_region
          _
        $region24: #{tpu_custom_call.1} parent=11 // pred_fallthru
          _
      $region12: #{tpu_custom_call.1} parent=5 // pred_fallthru
        _
      %p224 = scmp.lt.s32.totalorder %s23, 3
      // Predicated region
      $region25: #{tpu_custom_call.1} parent=5 // pred_check
        %p225 = pneg %p224
      $region26: #{tpu_custom_call.1} parent=5 // pred_check_branch
        %227 = sbr.rel (%p225) target = $region28
      $region27: #{tpu_custom_call.1} parent=5 // pred_region
        // Predicated region
        $region29: #{tpu_custom_call.1} parent=27 // pred_check
          %p228 = pneg %p43
        $region30: #{tpu_custom_call.1} parent=27 // pred_check_branch
          %230 = sbr.rel (%p228) target = $region32
        $region31: #{tpu_custom_call.1} parent=27 // pred_region
          %s231 = sand.u32 %s33, 1
          %s232 = scalar_lea.sflag [#allocation3], %s231
          %s233 = sand.u32 %s33, 1
          %s234 = smul.addr %s233, 128
          %s235 = scalar_lea.vmem [#allocation2], %s234
          %s236 = smul.u32 32, %s23
          %s238 = ssub.s32 2048, 2048
          %239 = vsyncadd %s232, %s238
          %s240 = smul.addr %s236, 64
          %s241 = scalar_lea.hbm %s0, %s240
          %s242 = sshll.u32 %s235, 4
          %s243 = int_to_ptr.vmem [resolvable:$true] %s242
          %248 = dma.hbm_to_vmem [thread:$0]  %s241, 2048, %s243, %s232, 64, 64, 4
        $region32: #{tpu_custom_call.1} parent=27 // pred_fallthru
          _
      $region28: #{tpu_custom_call.1} parent=5 // pred_fallthru
        _
      %p249 = scmp.le.s32.totalorder 1, %s23
      %p250 = scmp.lt.s32.totalorder %s23, 4
      %p251 = pnand %p249, %p250
      %p252 = pneg %p251
      // Predicated region
      $region33: #{tpu_custom_call.1} parent=5 // pred_check
        _
      $region34: #{tpu_custom_call.1} parent=5 // pred_check_branch
        %254 = sbr.rel (%p251) target = $region36
      $region35: #{tpu_custom_call.1} parent=5 // pred_region
        %s255 = ssub.s32 %s23, 1
        %s256 = sand.u32 %s36, 1
        %s257 = scalar_lea.sflag [#allocation3], %s256
        %s258 = sand.u32 %s36, 1
        %s259 = smul.addr %s258, 128
        %s260 = scalar_lea.vmem [#allocation2], %s259
        // Predicated region
        $region37: #{tpu_custom_call.1} parent=35 // pred_check
          %p261 = pneg %p49
        $region38: #{tpu_custom_call.1} parent=35 // pred_check_branch
          %263 = sbr.rel (%p261) target = $region40
        $region39: #{tpu_custom_call.1} parent=35 // pred_region
          %264 = dma.done %s257, 2048
        $region40: #{tpu_custom_call.1} parent=35 // pred_fallthru
          _
        // Predicated region
        $region41: #{tpu_custom_call.1} parent=35 // pred_check
          %p265 = pneg %p70
        $region42: #{tpu_custom_call.1} parent=35 // pred_check_branch
          %267 = sbr.rel (%p265) target = $region44
        $region43: #{tpu_custom_call.1} parent=35 // pred_region
          %268 = dma.done [#allocation6], 1024
        $region44: #{tpu_custom_call.1} parent=35 // pred_fallthru
          _
        %s269 = sand.u32 %s36, 1
        %s270 = scalar_lea.sflag [#allocation3], %s269
        %s271 = sand.u32 %s36, 1
        %s272 = smul.addr %s271, 128
        %s273 = scalar_lea.vmem [#allocation2], %s272
        %p274 = pneg %p49
        %p275 = pneg %p46
        %p276 = pneg %p70
        %p277 = pneg %p67
        %p278 = pneg %p91
        %p279 = pneg %p88
        %p280 = pneg %p112
        %p281 = pneg %p109
        %p282 = pneg %p138
        %p283 = pneg %p135
        %s284 = sand.u32 %s125, 1
        %s285 = scalar_lea.sflag [#allocation4], %s284
        %s286 = sand.u32 %s125, 1
        %s287 = smul.addr %s286, 128
        %s288 = scalar_lea.vmem [#allocation7], %s287
        %p289 = pneg %p164
        %p290 = pneg %p161
        %s291 = sand.u32 %s28, 1
        %s292 = scalar_lea.sflag [#allocation9], %s291
        %s293 = sand.u32 %s151, 1
        %s294 = smul.addr %s293, 2
        %s295 = scalar_lea.vmem [#allocation8], %s294
        %p296 = pneg %p190
        %p297 = pneg %p187
        %s298 = sand.u32 %s28, 1
        %s299 = scalar_lea.sflag [#allocation9], %s298
        %s300 = sand.u32 %s177, 1
        %s301 = smul.addr %s300, 2
        %s302 = scalar_lea.vmem [#allocation10], %s301
        %s303 = smul.u32 32, %s28
        %s304 = smul.u32 32, %s28
        %s305 = smul.u32 2, %s28
        %s306 = smul.u32 2, %s28
        %v308 = vld [vmem:[%s260] sm:$0xf]
        %v309 = vld [vmem:[%s260 + $0x4] sm:$0xf]
        %v310 = vld [vmem:[%s260 + $0x8] sm:$0xf]
        %v311 = vld [vmem:[%s260 + $0xc] sm:$0xf]
        %v312 = vld [vmem:[%s260 + $0x10] sm:$0xf]
        %v313 = vld [vmem:[%s260 + $0x14] sm:$0xf]
        %v314 = vld [vmem:[%s260 + $0x18] sm:$0xf]
        %v315 = vld [vmem:[%s260 + $0x1c] sm:$0xf]
        %v316 = vld [vmem:[%s260 + $0x20] sm:$0xf]
        %v317 = vld [vmem:[%s260 + $0x24] sm:$0xf]
        %v318 = vld [vmem:[%s260 + $0x28] sm:$0xf]
        %v319 = vld [vmem:[%s260 + $0x2c] sm:$0xf]
        %v320 = vld [vmem:[%s260 + $0x30] sm:$0xf]
        %v321 = vld [vmem:[%s260 + $0x34] sm:$0xf]
        %v322 = vld [vmem:[%s260 + $0x38] sm:$0xf]
        %v323 = vld [vmem:[%s260 + $0x3c] sm:$0xf]
        %v324 = vld [vmem:[%s260 + $0x40] sm:$0xf]
        %v325 = vld [vmem:[%s260 + $0x44] sm:$0xf]
        %v326 = vld [vmem:[%s260 + $0x48] sm:$0xf]
        %v327 = vld [vmem:[%s260 + $0x4c] sm:$0xf]
        %v328 = vld [vmem:[%s260 + $0x50] sm:$0xf]
        %v329 = vld [vmem:[%s260 + $0x54] sm:$0xf]
        %v330 = vld [vmem:[%s260 + $0x58] sm:$0xf]
        %v331 = vld [vmem:[%s260 + $0x5c] sm:$0xf]
        %v332 = vld [vmem:[%s260 + $0x60] sm:$0xf]
        %v333 = vld [vmem:[%s260 + $0x64] sm:$0xf]
        %v334 = vld [vmem:[%s260 + $0x68] sm:$0xf]
        %v335 = vld [vmem:[%s260 + $0x6c] sm:$0xf]
        %v336 = vld [vmem:[%s260 + $0x70] sm:$0xf]
        %v337 = vld [vmem:[%s260 + $0x74] sm:$0xf]
        %v338 = vld [vmem:[%s260 + $0x78] sm:$0xf]
        %v339 = vld [vmem:[%s260 + $0x7c] sm:$0xf]
        %v340 = vld [vmem:[#allocation5] sm:$0xf]
        %v341 = vld [vmem:[#allocation5 + $0x4] sm:$0xf]
        %v342 = vld [vmem:[#allocation5 + $0x8] sm:$0xf]
        %v343 = vld [vmem:[#allocation5 + $0xc] sm:$0xf]
        %v344 = vld [vmem:[#allocation5 + $0x10] sm:$0xf]
        %v345 = vld [vmem:[#allocation5 + $0x14] sm:$0xf]
        %v346 = vld [vmem:[#allocation5 + $0x18] sm:$0xf]
        %v347 = vld [vmem:[#allocation5 + $0x1c] sm:$0xf]
        %v348 = vld [vmem:[#allocation5 + $0x20] sm:$0xf]
        %v349 = vld [vmem:[#allocation5 + $0x24] sm:$0xf]
        %v350 = vld [vmem:[#allocation5 + $0x28] sm:$0xf]
        %v351 = vld [vmem:[#allocation5 + $0x2c] sm:$0xf]
        %v352 = vld [vmem:[#allocation5 + $0x30] sm:$0xf]
        %v353 = vld [vmem:[#allocation5 + $0x34] sm:$0xf]
        %v354 = vld [vmem:[#allocation5 + $0x38] sm:$0xf]
        %v355 = vld [vmem:[#allocation5 + $0x3c] sm:$0xf]
        %v388 = vunpack.c.l.b16 %v308
        %v389 = vunpack.c.l.b16 %v309
        %v390 = vunpack.c.l.b16 %v310
        %v391 = vunpack.c.l.b16 %v311
        %v392 = vunpack.c.l.b16 %v312
        %v393 = vunpack.c.l.b16 %v313
        %v394 = vunpack.c.l.b16 %v314
        %v395 = vunpack.c.l.b16 %v315
        %v396 = vunpack.c.l.b16 %v316
        %v397 = vunpack.c.l.b16 %v317
        %v398 = vunpack.c.l.b16 %v318
        %v399 = vunpack.c.l.b16 %v319
        %v400 = vunpack.c.l.b16 %v320
        %v401 = vunpack.c.l.b16 %v321
        %v402 = vunpack.c.l.b16 %v322
        %v403 = vunpack.c.l.b16 %v323
        %v404 = vunpack.c.l.b16 %v324
        %v405 = vunpack.c.l.b16 %v325
        %v406 = vunpack.c.l.b16 %v326
        %v407 = vunpack.c.l.b16 %v327
        %v408 = vunpack.c.l.b16 %v328
        %v409 = vunpack.c.l.b16 %v329
        %v410 = vunpack.c.l.b16 %v330
        %v411 = vunpack.c.l.b16 %v331
        %v412 = vunpack.c.l.b16 %v332
        %v413 = vunpack.c.l.b16 %v333
        %v414 = vunpack.c.l.b16 %v334
        %v415 = vunpack.c.l.b16 %v335
        %v416 = vunpack.c.l.b16 %v336
        %v417 = vunpack.c.l.b16 %v337
        %v418 = vunpack.c.l.b16 %v338
        %v419 = vunpack.c.l.b16 %v339
        %v420 = vpack.c.b16 %v389, %v388
        %v421 = vpack.c.b16 %v391, %v390
        %v422 = vpack.c.b16 %v393, %v392
        %v423 = vpack.c.b16 %v395, %v394
        %v424 = vpack.c.b16 %v397, %v396
        %v425 = vpack.c.b16 %v399, %v398
        %v426 = vpack.c.b16 %v401, %v400
        %v427 = vpack.c.b16 %v403, %v402
        %v428 = vpack.c.b16 %v405, %v404
        %v429 = vpack.c.b16 %v407, %v406
        %v430 = vpack.c.b16 %v409, %v408
        %v431 = vpack.c.b16 %v411, %v410
        %v432 = vpack.c.b16 %v413, %v412
        %v433 = vpack.c.b16 %v415, %v414
        %v434 = vpack.c.b16 %v417, %v416
        %v435 = vpack.c.b16 %v419, %v418
        %v468 = vunpack.c.l.b16 %v340
        %v469 = vunpack.c.l.b16 %v341
        %v470 = vunpack.c.l.b16 %v342
        %v471 = vunpack.c.l.b16 %v343
        %v472 = vunpack.c.l.b16 %v344
        %v473 = vunpack.c.l.b16 %v345
        %v474 = vunpack.c.l.b16 %v346
        %v475 = vunpack.c.l.b16 %v347
        %v476 = vunpack.c.l.b16 %v348
        %v477 = vunpack.c.l.b16 %v349
        %v478 = vunpack.c.l.b16 %v350
        %v479 = vunpack.c.l.b16 %v351
        %v480 = vunpack.c.l.b16 %v352
        %v481 = vunpack.c.l.b16 %v353
        %v482 = vunpack.c.l.b16 %v354
        %v483 = vunpack.c.l.b16 %v355
        %v484 = vpack.c.b16 %v469, %v468
        %v485 = vpack.c.b16 %v471, %v470
        %v486 = vpack.c.b16 %v473, %v472
        %v487 = vpack.c.b16 %v475, %v474
        %v488 = vpack.c.b16 %v477, %v476
        %v489 = vpack.c.b16 %v479, %v478
        %v490 = vpack.c.b16 %v481, %v480
        %v491 = vpack.c.b16 %v483, %v482
        %500 = vmatprep.subr.bf16.mxu0 0
        %501 = vmatpush1.bf16.msra.mxu0 %v491
        %502 = vmatprep.subr.bf16.mxu0 0
        %503 = vmatpush1.bf16.msra.mxu0 %v490
        %504 = vmatprep.subr.bf16.mxu0 0
        %505 = vmatpush1.bf16.msra.mxu0 %v489
        %506 = vmatprep.subr.bf16.mxu0 0
        %507 = vmatpush1.bf16.msra.mxu0 %v488
        %508 = vmatprep.subr.bf16.mxu0 0
        %509 = vmatpush1.bf16.msra.mxu0 %v487
        %510 = vmatprep.subr.bf16.mxu0 0
        %511 = vmatpush1.bf16.msra.mxu0 %v486
        %512 = vmatprep.subr.bf16.mxu0 0
        %513 = vmatpush1.bf16.msra.mxu0 %v485
        %514 = vmatprep.subr.bf16.mxu0 0
        %515 = vmatpush1.bf16.msra.mxu0 %v484
        %516 = vmatprep.subr.bf16.mxu0 0
        %517 = vmatpush2.bf16.msra.mxu0 0
        %518 = vmatprep.subr.bf16.mxu0 0
        %519 = vmatpush2.bf16.msra.mxu0 0
        %520 = vmatprep.subr.bf16.mxu0 0
        %521 = vmatpush2.bf16.msra.mxu0 0
        %522 = vmatprep.subr.bf16.mxu0 0
        %523 = vmatpush2.bf16.msra.mxu0 0
        %524 = vmatprep.subr.bf16.mxu0 0
        %525 = vmatpush2.bf16.msra.mxu0 0
        %526 = vmatprep.subr.bf16.mxu0 0
        %527 = vmatpush2.bf16.msra.mxu0 0
        %528 = vmatprep.subr.bf16.mxu0 0
        %529 = vmatpush2.bf16.msra.mxu0 0
        %530 = vmatprep.subr.bf16.mxu0 0
        %531 = vmatpush2.bf16.msra.mxu0 0
        %532 = vmatprep.mubr.bf16.mxu0 0
        %533 = vmatmul.mubr.bf16.gmra.mxu0 %v420
        %v534 = vpop.f32.mrf.mxu0
        %v535 = vadd.f32 0.0, %v534
        %v536 = vpop.f32.mrf.mxu0
        %v537 = vpop.f32.mrf.mxu0
        %v538 = vadd.f32 0.0, %v537
        %v539 = vpop.f32.mrf.mxu0
        %540 = vmatprep.mubr.bf16.mxu0 0
        %541 = vmatmul.mubr.bf16.gmra.mxu0 %v421
        %v542 = vpop.f32.mrf.mxu0
        %v543 = vadd.f32 0.0, %v542
        %v544 = vpop.f32.mrf.mxu0
        %v545 = vpop.f32.mrf.mxu0
        %v546 = vadd.f32 0.0, %v545
        %v547 = vpop.f32.mrf.mxu0
        %548 = vmatprep.mubr.bf16.mxu0 0
        %549 = vmatmul.mubr.bf16.gmra.mxu0 %v422
        %v550 = vpop.f32.mrf.mxu0
        %v551 = vadd.f32 0.0, %v550
        %v552 = vpop.f32.mrf.mxu0
        %v553 = vpop.f32.mrf.mxu0
        %v554 = vadd.f32 0.0, %v553
        %v555 = vpop.f32.mrf.mxu0
        %556 = vmatprep.mubr.bf16.mxu0 0
        %557 = vmatmul.mubr.bf16.gmra.mxu0 %v423
        %v558 = vpop.f32.mrf.mxu0
        %v559 = vadd.f32 0.0, %v558
        %v560 = vpop.f32.mrf.mxu0
        %v561 = vpop.f32.mrf.mxu0
        %v562 = vadd.f32 0.0, %v561
        %v563 = vpop.f32.mrf.mxu0
        %564 = vmatprep.mubr.bf16.mxu0 0
        %565 = vmatmul.mubr.bf16.gmra.mxu0 %v424
        %v566 = vpop.f32.mrf.mxu0
        %v567 = vadd.f32 0.0, %v566
        %v568 = vpop.f32.mrf.mxu0
        %v569 = vpop.f32.mrf.mxu0
        %v570 = vadd.f32 0.0, %v569
        %v571 = vpop.f32.mrf.mxu0
        %572 = vmatprep.mubr.bf16.mxu0 0
        %573 = vmatmul.mubr.bf16.gmra.mxu0 %v425
        %v574 = vpop.f32.mrf.mxu0
        %v575 = vadd.f32 0.0, %v574
        %v576 = vpop.f32.mrf.mxu0
        %v577 = vpop.f32.mrf.mxu0
        %v578 = vadd.f32 0.0, %v577
        %v579 = vpop.f32.mrf.mxu0
        %580 = vmatprep.mubr.bf16.mxu0 0
        %581 = vmatmul.mubr.bf16.gmra.mxu0 %v426
        %v582 = vpop.f32.mrf.mxu0
        %v583 = vadd.f32 0.0, %v582
        %v584 = vpop.f32.mrf.mxu0
        %v585 = vpop.f32.mrf.mxu0
        %v586 = vadd.f32 0.0, %v585
        %v587 = vpop.f32.mrf.mxu0
        %588 = vmatprep.mubr.bf16.mxu0 0
        %589 = vmatmul.mubr.bf16.gmra.mxu0 %v427
        %v590 = vpop.f32.mrf.mxu0
        %v591 = vadd.f32 0.0, %v590
        %v592 = vpop.f32.mrf.mxu0
        %v593 = vpop.f32.mrf.mxu0
        %v594 = vadd.f32 0.0, %v593
        %v595 = vpop.f32.mrf.mxu0
        %596 = vmatprep.mubr.bf16.mxu0 0
        %597 = vmatmul.mubr.bf16.gmra.mxu0 %v428
        %v598 = vpop.f32.mrf.mxu0
        %v599 = vadd.f32 0.0, %v598
        %v600 = vpop.f32.mrf.mxu0
        %v601 = vpop.f32.mrf.mxu0
        %v602 = vadd.f32 0.0, %v601
        %v603 = vpop.f32.mrf.mxu0
        %604 = vmatprep.mubr.bf16.mxu0 0
        %605 = vmatmul.mubr.bf16.gmra.mxu0 %v429
        %v606 = vpop.f32.mrf.mxu0
        %v607 = vadd.f32 0.0, %v606
        %v608 = vpop.f32.mrf.mxu0
        %v609 = vpop.f32.mrf.mxu0
        %v610 = vadd.f32 0.0, %v609
        %v611 = vpop.f32.mrf.mxu0
        %612 = vmatprep.mubr.bf16.mxu0 0
        %613 = vmatmul.mubr.bf16.gmra.mxu0 %v430
        %v614 = vpop.f32.mrf.mxu0
        %v615 = vadd.f32 0.0, %v614
        %v616 = vpop.f32.mrf.mxu0
        %v617 = vpop.f32.mrf.mxu0
        %v618 = vadd.f32 0.0, %v617
        %v619 = vpop.f32.mrf.mxu0
        %620 = vmatprep.mubr.bf16.mxu0 0
        %621 = vmatmul.mubr.bf16.gmra.mxu0 %v431
        %v622 = vpop.f32.mrf.mxu0
        %v623 = vadd.f32 0.0, %v622
        %v624 = vpop.f32.mrf.mxu0
        %v625 = vpop.f32.mrf.mxu0
        %v626 = vadd.f32 0.0, %v625
        %v627 = vpop.f32.mrf.mxu0
        %628 = vmatprep.mubr.bf16.mxu0 0
        %629 = vmatmul.mubr.bf16.gmra.mxu0 %v432
        %v630 = vpop.f32.mrf.mxu0
        %v631 = vadd.f32 0.0, %v630
        %v632 = vpop.f32.mrf.mxu0
        %v633 = vpop.f32.mrf.mxu0
        %v634 = vadd.f32 0.0, %v633
        %v635 = vpop.f32.mrf.mxu0
        %636 = vmatprep.mubr.bf16.mxu0 0
        %637 = vmatmul.mubr.bf16.gmra.mxu0 %v433
        %v638 = vpop.f32.mrf.mxu0
        %v639 = vadd.f32 0.0, %v638
        %v640 = vpop.f32.mrf.mxu0
        %v641 = vpop.f32.mrf.mxu0
        %v642 = vadd.f32 0.0, %v641
        %v643 = vpop.f32.mrf.mxu0
        %644 = vmatprep.mubr.bf16.mxu0 0
        %645 = vmatmul.mubr.bf16.gmra.mxu0 %v434
        %v646 = vpop.f32.mrf.mxu0
        %v647 = vadd.f32 0.0, %v646
        %v648 = vpop.f32.mrf.mxu0
        %v649 = vpop.f32.mrf.mxu0
        %v650 = vadd.f32 0.0, %v649
        %v651 = vpop.f32.mrf.mxu0
        %652 = vmatprep.mubr.bf16.mxu0 0
        %653 = vmatmul.mubr.bf16.gmra.mxu0 %v435
        %v654 = vpop.f32.mrf.mxu0
        %v655 = vadd.f32 0.0, %v654
        %v656 = vpop.f32.mrf.mxu0
        %v657 = vpop.f32.mrf.mxu0
        %v658 = vadd.f32 0.0, %v657
        %v659 = vpop.f32.mrf.mxu0
        %660 = vdwg.mxu0
        %v661 = vpack.c.bf16 %v538, %v535
        %v662 = vpack.c.bf16 %v546, %v543
        %v663 = vpack.c.bf16 %v554, %v551
        %v664 = vpack.c.bf16 %v562, %v559
        %v665 = vpack.c.bf16 %v570, %v567
        %v666 = vpack.c.bf16 %v578, %v575
        %v667 = vpack.c.bf16 %v586, %v583
        %v668 = vpack.c.bf16 %v594, %v591
        %v669 = vpack.c.bf16 %v602, %v599
        %v670 = vpack.c.bf16 %v610, %v607
        %v671 = vpack.c.bf16 %v618, %v615
        %v672 = vpack.c.bf16 %v626, %v623
        %v673 = vpack.c.bf16 %v634, %v631
        %v674 = vpack.c.bf16 %v642, %v639
        %v675 = vpack.c.bf16 %v650, %v647
        %v676 = vpack.c.bf16 %v658, %v655
        %v693 = vunpack.c.l.b16 %v661
        %v694 = vunpack.c.h.b16 %v661
        %v695 = vunpack.c.l.b16 %v662
        %v696 = vunpack.c.h.b16 %v662
        %v697 = vunpack.c.l.b16 %v663
        %v698 = vunpack.c.h.b16 %v663
        %v699 = vunpack.c.l.b16 %v664
        %v700 = vunpack.c.h.b16 %v664
        %v701 = vunpack.c.l.b16 %v665
        %v702 = vunpack.c.h.b16 %v665
        %v703 = vunpack.c.l.b16 %v666
        %v704 = vunpack.c.h.b16 %v666
        %v705 = vunpack.c.l.b16 %v667
        %v706 = vunpack.c.h.b16 %v667
        %v707 = vunpack.c.l.b16 %v668
        %v708 = vunpack.c.h.b16 %v668
        %v709 = vunpack.c.l.b16 %v669
        %v710 = vunpack.c.h.b16 %v669
        %v711 = vunpack.c.l.b16 %v670
        %v712 = vunpack.c.h.b16 %v670
        %v713 = vunpack.c.l.b16 %v671
        %v714 = vunpack.c.h.b16 %v671
        %v715 = vunpack.c.l.b16 %v672
        %v716 = vunpack.c.h.b16 %v672
        %v717 = vunpack.c.l.b16 %v673
        %v718 = vunpack.c.h.b16 %v673
        %v719 = vunpack.c.l.b16 %v674
        %v720 = vunpack.c.h.b16 %v674
        %v721 = vunpack.c.l.b16 %v675
        %v722 = vunpack.c.h.b16 %v675
        %v723 = vunpack.c.l.b16 %v676
        %v724 = vunpack.c.h.b16 %v676
        %v725 = vpack.c.b16 %v693, %v693
        %v726 = vpack.c.b16 %v694, %v694
        %v727 = vpack.c.b16 %v695, %v695
        %v728 = vpack.c.b16 %v696, %v696
        %v729 = vpack.c.b16 %v697, %v697
        %v730 = vpack.c.b16 %v698, %v698
        %v731 = vpack.c.b16 %v699, %v699
        %v732 = vpack.c.b16 %v700, %v700
        %v733 = vpack.c.b16 %v701, %v701
        %v734 = vpack.c.b16 %v702, %v702
        %v735 = vpack.c.b16 %v703, %v703
        %v736 = vpack.c.b16 %v704, %v704
        %v737 = vpack.c.b16 %v705, %v705
        %v738 = vpack.c.b16 %v706, %v706
        %v739 = vpack.c.b16 %v707, %v707
        %v740 = vpack.c.b16 %v708, %v708
        %v741 = vpack.c.b16 %v709, %v709
        %v742 = vpack.c.b16 %v710, %v710
        %v743 = vpack.c.b16 %v711, %v711
        %v744 = vpack.c.b16 %v712, %v712
        %v745 = vpack.c.b16 %v713, %v713
        %v746 = vpack.c.b16 %v714, %v714
        %v747 = vpack.c.b16 %v715, %v715
        %v748 = vpack.c.b16 %v716, %v716
        %v749 = vpack.c.b16 %v717, %v717
        %v750 = vpack.c.b16 %v718, %v718
        %v751 = vpack.c.b16 %v719, %v719
        %v752 = vpack.c.b16 %v720, %v720
        %v753 = vpack.c.b16 %v721, %v721
        %v754 = vpack.c.b16 %v722, %v722
        %v755 = vpack.c.b16 %v723, %v723
        %v756 = vpack.c.b16 %v724, %v724
        %789 = vst [vmem:[%s288] sm:$0xf] %v725
        %790 = vst [vmem:[%s288 + $0x4] sm:$0xf] %v726
        %791 = vst [vmem:[%s288 + $0x8] sm:$0xf] %v727
        %792 = vst [vmem:[%s288 + $0xc] sm:$0xf] %v728
        %793 = vst [vmem:[%s288 + $0x10] sm:$0xf] %v729
        %794 = vst [vmem:[%s288 + $0x14] sm:$0xf] %v730
        %795 = vst [vmem:[%s288 + $0x18] sm:$0xf] %v731
        %796 = vst [vmem:[%s288 + $0x1c] sm:$0xf] %v732
        %797 = vst [vmem:[%s288 + $0x20] sm:$0xf] %v733
        %798 = vst [vmem:[%s288 + $0x24] sm:$0xf] %v734
        %799 = vst [vmem:[%s288 + $0x28] sm:$0xf] %v735
        %800 = vst [vmem:[%s288 + $0x2c] sm:$0xf] %v736
        %801 = vst [vmem:[%s288 + $0x30] sm:$0xf] %v737
        %802 = vst [vmem:[%s288 + $0x34] sm:$0xf] %v738
        %803 = vst [vmem:[%s288 + $0x38] sm:$0xf] %v739
        %804 = vst [vmem:[%s288 + $0x3c] sm:$0xf] %v740
        %805 = vst [vmem:[%s288 + $0x40] sm:$0xf] %v741
        %806 = vst [vmem:[%s288 + $0x44] sm:$0xf] %v742
        %807 = vst [vmem:[%s288 + $0x48] sm:$0xf] %v743
        %808 = vst [vmem:[%s288 + $0x4c] sm:$0xf] %v744
        %809 = vst [vmem:[%s288 + $0x50] sm:$0xf] %v745
        %810 = vst [vmem:[%s288 + $0x54] sm:$0xf] %v746
        %811 = vst [vmem:[%s288 + $0x58] sm:$0xf] %v747
        %812 = vst [vmem:[%s288 + $0x5c] sm:$0xf] %v748
        %813 = vst [vmem:[%s288 + $0x60] sm:$0xf] %v749
        %814 = vst [vmem:[%s288 + $0x64] sm:$0xf] %v750
        %815 = vst [vmem:[%s288 + $0x68] sm:$0xf] %v751
        %816 = vst [vmem:[%s288 + $0x6c] sm:$0xf] %v752
        %817 = vst [vmem:[%s288 + $0x70] sm:$0xf] %v753
        %818 = vst [vmem:[%s288 + $0x74] sm:$0xf] %v754
        %819 = vst [vmem:[%s288 + $0x78] sm:$0xf] %v755
        %820 = vst [vmem:[%s288 + $0x7c] sm:$0xf] %v756
        %v821 = vld [vmem:[%s2] sm:$0x1]
        %822 = vmatprep.subr.mxu0 0.0
        %823 = vmatpush1.xpose.msra.mxu0 %v594
        %824 = vmatprep.subr.mxu0 0.0
        %825 = vmatpush1.xpose.msra.mxu0 %v591
        %826 = vmatprep.subr.mxu0 0.0
        %827 = vmatpush1.xpose.msra.mxu0 %v586
        %828 = vmatprep.subr.mxu0 0.0
        %829 = vmatpush1.xpose.msra.mxu0 %v583
        %830 = vmatprep.subr.mxu0 0.0
        %831 = vmatpush1.xpose.msra.mxu0 %v578
        %832 = vmatprep.subr.mxu0 0.0
        %833 = vmatpush1.xpose.msra.mxu0 %v575
        %834 = vmatprep.subr.mxu0 0.0
        %835 = vmatpush1.xpose.msra.mxu0 %v570
        %836 = vmatprep.subr.mxu0 0.0
        %837 = vmatpush1.xpose.msra.mxu0 %v567
        %838 = vmatprep.subr.mxu0 0.0
        %839 = vmatpush1.xpose.msra.mxu0 %v562
        %840 = vmatprep.subr.mxu0 0.0
        %841 = vmatpush1.xpose.msra.mxu0 %v559
        %842 = vmatprep.subr.mxu0 0.0
        %843 = vmatpush1.xpose.msra.mxu0 %v554
        %844 = vmatprep.subr.mxu0 0.0
        %845 = vmatpush1.xpose.msra.mxu0 %v551
        %846 = vmatprep.subr.mxu0 0.0
        %847 = vmatpush1.xpose.msra.mxu0 %v546
        %848 = vmatprep.subr.mxu0 0.0
        %849 = vmatpush1.xpose.msra.mxu0 %v543
        %850 = vmatprep.subr.mxu0 0.0
        %851 = vmatpush1.xpose.msra.mxu0 %v538
        %852 = vmatprep.subr.mxu0 0.0
        %853 = vmatpush1.xpose.msra.mxu0 %v535
        %854 = vmatprep.subr.mxu0 0.0
        %855 = vmatpush2.xpose.msra.mxu0 %v658
        %856 = vmatprep.subr.mxu0 0.0
        %857 = vmatpush2.xpose.msra.mxu0 %v655
        %858 = vmatprep.subr.mxu0 0.0
        %859 = vmatpush2.xpose.msra.mxu0 %v650
        %860 = vmatprep.subr.mxu0 0.0
        %861 = vmatpush2.xpose.msra.mxu0 %v647
        %862 = vmatprep.subr.mxu0 0.0
        %863 = vmatpush2.xpose.msra.mxu0 %v642
        %864 = vmatprep.subr.mxu0 0.0
        %865 = vmatpush2.xpose.msra.mxu0 %v639
        %866 = vmatprep.subr.mxu0 0.0
        %867 = vmatpush2.xpose.msra.mxu0 %v634
        %868 = vmatprep.subr.mxu0 0.0
        %869 = vmatpush2.xpose.msra.mxu0 %v631
        %870 = vmatprep.subr.mxu0 0.0
        %871 = vmatpush2.xpose.msra.mxu0 %v626
        %872 = vmatprep.subr.mxu0 0.0
        %873 = vmatpush2.xpose.msra.mxu0 %v623
        %874 = vmatprep.subr.mxu0 0.0
        %875 = vmatpush2.xpose.msra.mxu0 %v618
        %876 = vmatprep.subr.mxu0 0.0
        %877 = vmatpush2.xpose.msra.mxu0 %v615
        %878 = vmatprep.subr.mxu0 0.0
        %879 = vmatpush2.xpose.msra.mxu0 %v610
        %880 = vmatprep.subr.mxu0 0.0
        %881 = vmatpush2.xpose.msra.mxu0 %v607
        %882 = vmatprep.subr.mxu0 0.0
        %883 = vmatpush2.xpose.msra.mxu0 %v602
        %884 = vmatprep.subr.mxu0 0.0
        %885 = vmatpush2.xpose.msra.mxu0 %v599
        %886 = vmatprep.mubr.f32.mxu0 0.0
        %887 = vmatmul.mubr.f32.gmra.mxu0 %v821
        %v888 = vpop.f32.mrf.mxu0
        %v889 = vadd.f32 0.0, %v888
        %v890 = vpop.f32.mrf.mxu0
        %v891 = vadd.f32 0.0, %v890
        %892 = vdwg.mxu0
        %v895 = vcombine.low %v889, %v891
        %v897 = vunpack.c.l.s4 1966171168
        %v898 = vunpack.c.0.s8 %v897
        %v899 = vlaneseq
        %v900 = vshrl.u32 %v899, 7
        %v901 = vsub.s32 %v898, %v900
        %v902 = vrot.slane %v895, %v901
        %v904 = vunpack.c.l.s4 1966171168
        %v905 = vunpack.c.0.s8 %v904
        %v906 = vlaneseq
        %v907 = vshrl.u32 %v906, 7
        %v908 = vsub.s32 %v905, %v907
        %v909 = vrot.slane %v902, %v908
        %v911 = vlaneseq
        %vm912 = vcmp.ge.s32.totalorder %v911, 0
        %vm913 = vcmp.lt.s32.totalorder %v911, 256
        %vm914 = vmand %vm912, %vm913
        %915 = vst.msk [vmem:[%s295] sm:$0x3] %vm914, %v909
        %v916 = vld [vmem:[%s3] sm:$0x1]
        %917 = vmatprep.subr.mxu0 0.0
        %918 = vmatpush1.xpose.msra.mxu0 %v594
        %919 = vmatprep.subr.mxu0 0.0
        %920 = vmatpush1.xpose.msra.mxu0 %v591
        %921 = vmatprep.subr.mxu0 0.0
        %922 = vmatpush1.xpose.msra.mxu0 %v586
        %923 = vmatprep.subr.mxu0 0.0
        %924 = vmatpush1.xpose.msra.mxu0 %v583
        %925 = vmatprep.subr.mxu0 0.0
        %926 = vmatpush1.xpose.msra.mxu0 %v578
        %927 = vmatprep.subr.mxu0 0.0
        %928 = vmatpush1.xpose.msra.mxu0 %v575
        %929 = vmatprep.subr.mxu0 0.0
        %930 = vmatpush1.xpose.msra.mxu0 %v570
        %931 = vmatprep.subr.mxu0 0.0
        %932 = vmatpush1.xpose.msra.mxu0 %v567
        %933 = vmatprep.subr.mxu0 0.0
        %934 = vmatpush1.xpose.msra.mxu0 %v562
        %935 = vmatprep.subr.mxu0 0.0
        %936 = vmatpush1.xpose.msra.mxu0 %v559
        %937 = vmatprep.subr.mxu0 0.0
        %938 = vmatpush1.xpose.msra.mxu0 %v554
        %939 = vmatprep.subr.mxu0 0.0
        %940 = vmatpush1.xpose.msra.mxu0 %v551
        %941 = vmatprep.subr.mxu0 0.0
        %942 = vmatpush1.xpose.msra.mxu0 %v546
        %943 = vmatprep.subr.mxu0 0.0
        %944 = vmatpush1.xpose.msra.mxu0 %v543
        %945 = vmatprep.subr.mxu0 0.0
        %946 = vmatpush1.xpose.msra.mxu0 %v538
        %947 = vmatprep.subr.mxu0 0.0
        %948 = vmatpush1.xpose.msra.mxu0 %v535
        %949 = vmatprep.subr.mxu0 0.0
        %950 = vmatpush2.xpose.msra.mxu0 %v658
        %951 = vmatprep.subr.mxu0 0.0
        %952 = vmatpush2.xpose.msra.mxu0 %v655
        %953 = vmatprep.subr.mxu0 0.0
        %954 = vmatpush2.xpose.msra.mxu0 %v650
        %955 = vmatprep.subr.mxu0 0.0
        %956 = vmatpush2.xpose.msra.mxu0 %v647
        %957 = vmatprep.subr.mxu0 0.0
        %958 = vmatpush2.xpose.msra.mxu0 %v642
        %959 = vmatprep.subr.mxu0 0.0
        %960 = vmatpush2.xpose.msra.mxu0 %v639
        %961 = vmatprep.subr.mxu0 0.0
        %962 = vmatpush2.xpose.msra.mxu0 %v634
        %963 = vmatprep.subr.mxu0 0.0
        %964 = vmatpush2.xpose.msra.mxu0 %v631
        %965 = vmatprep.subr.mxu0 0.0
        %966 = vmatpush2.xpose.msra.mxu0 %v626
        %967 = vmatprep.subr.mxu0 0.0
        %968 = vmatpush2.xpose.msra.mxu0 %v623
        %969 = vmatprep.subr.mxu0 0.0
        %970 = vmatpush2.xpose.msra.mxu0 %v618
        %971 = vmatprep.subr.mxu0 0.0
        %972 = vmatpush2.xpose.msra.mxu0 %v615
        %973 = vmatprep.subr.mxu0 0.0
        %974 = vmatpush2.xpose.msra.mxu0 %v610
        %975 = vmatprep.subr.mxu0 0.0
        %976 = vmatpush2.xpose.msra.mxu0 %v607
        %977 = vmatprep.subr.mxu0 0.0
        %978 = vmatpush2.xpose.msra.mxu0 %v602
        %979 = vmatprep.subr.mxu0 0.0
        %980 = vmatpush2.xpose.msra.mxu0 %v599
        %981 = vmatprep.mubr.f32.mxu0 0.0
        %982 = vmatmul.mubr.f32.gmra.mxu0 %v916
        %v983 = vpop.f32.mrf.mxu0
        %v984 = vadd.f32 0.0, %v983
        %v985 = vpop.f32.mrf.mxu0
        %v986 = vadd.f32 0.0, %v985
        %987 = vdwg.mxu0
        %v990 = vcombine.low %v984, %v986
        %v992 = vunpack.c.l.s4 1966171168
        %v993 = vunpack.c.0.s8 %v992
        %v994 = vlaneseq
        %v995 = vshrl.u32 %v994, 7
        %v996 = vsub.s32 %v993, %v995
        %v997 = vrot.slane %v990, %v996
        %v999 = vunpack.c.l.s4 1966171168
        %v1000 = vunpack.c.0.s8 %v999
        %v1001 = vlaneseq
        %v1002 = vshrl.u32 %v1001, 7
        %v1003 = vsub.s32 %v1000, %v1002
        %v1004 = vrot.slane %v997, %v1003
        %1006 = vst.msk [vmem:[%s302] sm:$0x3] %vm914, %v1004
        %s1007 = sand.u32 %s125, 1
        %s1008 = scalar_lea.sflag [#allocation4], %s1007
        %s1009 = sand.u32 %s125, 1
        %s1010 = smul.addr %s1009, 128
        %s1011 = scalar_lea.vmem [#allocation7], %s1010
        %s1012 = sand.u32 %s28, 1
        %s1013 = scalar_lea.sflag [#allocation9], %s1012
        %s1014 = sand.u32 %s151, 1
        %s1015 = smul.addr %s1014, 2
        %s1016 = scalar_lea.vmem [#allocation8], %s1015
        %s1017 = sand.u32 %s28, 1
        %s1018 = scalar_lea.sflag [#allocation9], %s1017
        %s1019 = sand.u32 %s177, 1
        %s1020 = smul.addr %s1019, 2
        %s1021 = scalar_lea.vmem [#allocation10], %s1020
        // Predicated region
        $region45: #{tpu_custom_call.1} parent=35 // pred_check
          %p1022 = pneg %p135
        $region46: #{tpu_custom_call.1} parent=35 // pred_check_branch
          %1024 = sbr.rel (%p1022) target = $region48
        $region47: #{tpu_custom_call.1} parent=35 // pred_region
          %s1025 = smul.u32 32, %s28
          %s1027 = ssub.s32 2048, 2048
          %1028 = vsyncadd %s1008, %s1027
          %s1029 = smul.addr %s1025, 64
          %s1030 = scalar_lea.hbm %s4, %s1029
          %s1031 = sshll.u32 %s1011, 4
          %s1032 = int_to_ptr.vmem [resolvable:$true] %s1031
          %1037 = dma.vmem_to_hbm [thread:$0]  %s1032, 2048, %s1030, %s1008, 64, 64, 4
        $region48: #{tpu_custom_call.1} parent=35 // pred_fallthru
          _
        // Predicated region
        $region49: #{tpu_custom_call.1} parent=35 // pred_check
          %p1038 = pneg %p161
        $region50: #{tpu_custom_call.1} parent=35 // pred_check_branch
          %1040 = sbr.rel (%p1038) target = $region52
        $region51: #{tpu_custom_call.1} parent=35 // pred_region
          %s1041 = smul.u32 2, %s28
          %s1043 = ssub.s32 32, 32
          %1044 = vsyncadd %s1013, %s1043
          %s1045 = smul.addr %s1041, 16
          %s1046 = scalar_lea.hbm %s5, %s1045
          %s1048 = sshll.u32 %s1016, 4
          %s1049 = int_to_ptr.vmem [resolvable:$true] %s1048
          %1051 = dma.vmem_to_hbm [thread:$0]  %s1049, 32, %s1046, %s1013
        $region52: #{tpu_custom_call.1} parent=35 // pred_fallthru
          _
        // Predicated region
        $region53: #{tpu_custom_call.1} parent=35 // pred_check
          %p1052 = pneg %p187
        $region54: #{tpu_custom_call.1} parent=35 // pred_check_branch
          %1054 = sbr.rel (%p1052) target = $region56
        $region55: #{tpu_custom_call.1} parent=35 // pred_region
          %s1055 = smul.u32 2, %s28
          %s1057 = ssub.s32 32, 32
          %1058 = vsyncadd %s1018, %s1057
          %s1059 = smul.addr %s1055, 16
          %s1060 = scalar_lea.hbm %s6, %s1059
          %s1062 = sshll.u32 %s1021, 4
          %s1063 = int_to_ptr.vmem [resolvable:$true] %s1062
          %1065 = dma.vmem_to_hbm [thread:$0]  %s1063, 32, %s1060, %s1018
        $region56: #{tpu_custom_call.1} parent=35 // pred_fallthru
          _
      $region36: #{tpu_custom_call.1} parent=5 // pred_fallthru
        _
      %p1066 = scmp.le.s32.totalorder 2, %s23
      // Predicated region
      $region57: #{tpu_custom_call.1} parent=5 // pred_check
        %p1067 = pneg %p1066
      $region58: #{tpu_custom_call.1} parent=5 // pred_check_branch
        %1069 = sbr.rel (%p1067) target = $region60
      $region59: #{tpu_custom_call.1} parent=5 // pred_region
        %s1070 = ssub.s32 %s23, 2
        // Predicated region
        $region61: #{tpu_custom_call.1} parent=59 // pred_check
          %p1071 = pneg %p141
        $region62: #{tpu_custom_call.1} parent=59 // pred_check_branch
          %1073 = sbr.rel (%p1071) target = $region64
        $region63: #{tpu_custom_call.1} parent=59 // pred_region
          %s1074 = sand.u32 %s126, 1
          %s1075 = scalar_lea.sflag [#allocation4], %s1074
          %s1076 = sand.u32 %s126, 1
          %s1077 = smul.addr %s1076, 128
          %s1078 = scalar_lea.vmem [#allocation7], %s1077
          %1079 = dma.done %s1075, 2048
        $region64: #{tpu_custom_call.1} parent=59 // pred_fallthru
          _
        // Predicated region
        $region65: #{tpu_custom_call.1} parent=59 // pred_check
          %p1080 = pneg %p167
        $region66: #{tpu_custom_call.1} parent=59 // pred_check_branch
          %1082 = sbr.rel (%p1080) target = $region68
        $region67: #{tpu_custom_call.1} parent=59 // pred_region
          %s1083 = sand.u32 %s29, 1
          %s1084 = scalar_lea.sflag [#allocation9], %s1083
          %s1085 = sand.u32 %s152, 1
          %s1086 = smul.addr %s1085, 2
          %s1087 = scalar_lea.vmem [#allocation8], %s1086
          %1088 = dma.done %s1084, 32
        $region68: #{tpu_custom_call.1} parent=59 // pred_fallthru
          _
        // Predicated region
        $region69: #{tpu_custom_call.1} parent=59 // pred_check
          %p1089 = pneg %p193
        $region70: #{tpu_custom_call.1} parent=59 // pred_check_branch
          %1091 = sbr.rel (%p1089) target = $region72
        $region71: #{tpu_custom_call.1} parent=59 // pred_region
          %s1092 = sand.u32 %s29, 1
          %s1093 = scalar_lea.sflag [#allocation9], %s1092
          %s1094 = sand.u32 %s178, 1
          %s1095 = smul.addr %s1094, 2
          %s1096 = scalar_lea.vmem [#allocation10], %s1095
          %1097 = dma.done %s1093, 32
        $region72: #{tpu_custom_call.1} parent=59 // pred_fallthru
          _
      $region60: #{tpu_custom_call.1} parent=5 // pred_fallthru
        _
    $region6: #{tpu_custom_call.1} parent=1 // loop_footer
      %s27 = sadd.s32 1, %s23
    $region7: #{tpu_custom_call.1} parent=1 // loop_footer_branch
      %22 = sbr.rel target = $region3
    $region8: #{tpu_custom_call.1} parent=1 // loop_exit
      _
    %1098 = vsyncpa [#allocation3], 1
    %s1099 = scalar_lea.sflag [#allocation3], 1
    %1100 = vsyncpa %s1099, 1
    %1101 = vsyncpa [#allocation6], 1
    %1102 = vsyncpa [#allocation4], 1
    %s1103 = scalar_lea.sflag [#allocation4], 1
    %1104 = vsyncpa %s1103, 1
    %1105 = vsyncpa [#allocation9], 1
    %s1106 = scalar_lea.sflag [#allocation9], 1
    %1107 = vsyncpa %s1106, 1

</llo_original>
